<compile_context>
chip_gen: v5e
topology: v5e:2x2
jax: 0.10.0
libtpu: 0.0.40
codegen_flags: <defaults>
</compile_context>

<pallas_src>
import functools
import math

import numpy as np
import jax
import jax.numpy as jnp
from jax import lax
from jax.experimental import pallas as pl
from jax.experimental.pallas import tpu as pltpu

EPS = 1e-6          # Charbonnier eps (matches reference: sqrt(d*d + eps))
_LANE = 128         # vreg lane width
_SUBLANE = 8
_TM = 2048          # rows per grid step: 2048*128*4B = 1 MiB per f32 input block


# ----------------------------------------------------------------------------
# Pallas kernel factory: grand sum of sqrt((x - y)^2 + eps) over a (rows, 128)
# pair streamed in large blocks.  Returns (n_par, acc_rows, 128) partial sums
# that are reduced to a scalar in plain JAX.
# ----------------------------------------------------------------------------
@functools.lru_cache(maxsize=None)
def _make_charb_sum(tm, acc_rows, n_par, n_inner, n_blocks, tail_valid,
                    eps, x_dtype, y_dtype):
    blk = tm * _LANE
    ragged = tail_valid != blk            # last block has an invalid tail
    overshoot = (n_par * n_inner) != n_blocks
    plain_limit = n_blocks - 1 if ragged else n_blocks

    def in_map(p, i):
        g = p * n_inner + i
        if overshoot:
            # keep the DMA in-bounds for the (skipped) overshoot step
            g = jnp.minimum(g, n_blocks - 1)
        return (g, 0)

    def kernel(x_ref, y_ref, o_ref):
        p = pl.program_id(0)
        i = pl.program_id(1)

        @pl.when(i == 0)
        def _init():
            o_ref[...] = jnp.zeros_like(o_ref)

        # Native-dtype blocks, cast to f32 in-kernel (VPU); accumulator f32.
        x = x_ref[...].astype(jnp.float32)
        y = y_ref[...].astype(jnp.float32)
        d = x - y
        err = jnp.sqrt(d * d + eps)       # eps folded as a constant

        def fold(e):
            # (tm,128) -> (acc_rows,128): pure vreg adds over the leading
            # (non-tiled) axis; shrinks the resident output to 4 KiB.
            if tm == acc_rows:
                return e
            return jnp.sum(e.reshape(tm // acc_rows, acc_rows, _LANE), axis=0)

        if not ragged and not overshoot:
            # hot path: every block is fully valid
            o_ref[0] += fold(err)
        else:
            g = p * n_inner + i

            @pl.when(g < plain_limit)
            def _plain():                  # fully valid blocks: no mask math
                o_ref[0] += fold(err)

            if ragged:
                @pl.when(g == n_blocks - 1)
                def _tail():               # only the ragged block pays for the mask
                    r = lax.broadcasted_iota(jnp.int32, (tm, _LANE), 0)
                    c = lax.broadcasted_iota(jnp.int32, (tm, _LANE), 1)
                    flat = r * _LANE + c   # local offset within block: fits int32
                    o_ref[0] += fold(jnp.where(flat < tail_valid, err, 0.0))

    xb = jnp.dtype(x_dtype).itemsize
    yb = jnp.dtype(y_dtype).itemsize
    cost = pl.CostEstimate(
        flops=6 * n_blocks * blk,
        transcendentals=n_blocks * blk,
        bytes_accessed=n_blocks * blk * (xb + yb) + n_par * acc_rows * _LANE * 4,
    )

    return pl.pallas_call(
        kernel,
        out_shape=jax.ShapeDtypeStruct((n_par, acc_rows, _LANE), jnp.float32),
        grid_spec=pltpu.PrefetchScalarGridSpec(
            num_scalar_prefetch=0,
            grid=(n_par, n_inner),
            in_specs=[
                pl.BlockSpec((tm, _LANE), in_map),
                pl.BlockSpec((tm, _LANE), in_map),
            ],
            out_specs=pl.BlockSpec((1, acc_rows, _LANE), lambda p, i: (p, 0, 0)),
        ),
        # TODO(synk): on v7x, pltpu.CORE_PARALLEL on the leading axis would
        # guarantee the megacore split; "parallel" is kept for portability.
        compiler_params=pltpu.CompilerParams(
            dimension_semantics=("parallel", "arbitrary")),
        cost_estimate=cost,
    )


def _charb_grand_sum(x, y, eps=EPS, tm=_TM):
    """sum(sqrt((x - y)^2 + eps)) over all elements, streamed through Pallas."""
    assert x.shape == y.shape, (x.shape, y.shape)
    total = int(x.size)

    xf = x.reshape(-1)                     # free reshapes of contiguous buffers
    yf = y.reshape(-1)
    rows = -(-total // _LANE)              # ceil(total / 128)
    lane_pad = rows * _LANE - total
    if lane_pad:
        # TODO(synk): sizes that are not a multiple of 128 still pay one small
        # HBM pad copy; everything else streams the original buffers directly.
        xf = jnp.pad(xf, (0, lane_pad))
        yf = jnp.pad(yf, (0, lane_pad))
    x2d = xf.reshape(rows, _LANE)
    y2d = yf.reshape(rows, _LANE)

    if rows >= _SUBLANE:
        tm_eff = min(tm, (rows // _SUBLANE) * _SUBLANE)   # multiple of 8
    else:
        tm_eff = rows                                     # equals full dim
    n_blocks = -(-rows // tm_eff)
    n_par = 2 if n_blocks >= 2 else 1      # megacore split (v7x); harmless on 1-TC
    n_inner = -(-n_blocks // n_par)
    blk = tm_eff * _LANE
    tail_valid = int(total - (n_blocks - 1) * blk)        # static, no int32 overflow
    acc_rows = min(_SUBLANE, tm_eff)

    call = _make_charb_sum(tm_eff, acc_rows, n_par, n_inner, n_blocks,
                           tail_valid, float(eps),
                           str(x2d.dtype), str(y2d.dtype))
    partials = call(x2d, y2d)              # (n_par, acc_rows, 128)
    return jnp.sum(partials, dtype=jnp.float32)


def charbonnier_mean(x, y, eps=EPS):
    """mean(sqrt((x - y)^2 + eps)) — L1_Charbonnier_loss equivalent."""
    return _charb_grand_sum(x, y, eps) / jnp.float32(x.size)


# ----------------------------------------------------------------------------
# Split_freq: Butterworth frequency-band decomposition (low -> high).
# TODO(synk): original Split_freq source not provided; this is a standard
# Butterworth FFT band split whose bands sum back to the input.
# ----------------------------------------------------------------------------
@functools.lru_cache(maxsize=None)
def _butterworth_band_masks(h, w, freq_c, order=2, reverse=False):
    fy = np.fft.fftfreq(h).astype(np.float32)
    fx = np.fft.fftfreq(w).astype(np.float32)
    D = np.sqrt(fy[:, None] ** 2 + fx[None, :] ** 2)
    d_max = math.sqrt(0.5)                 # max normalized radius
    lowpass = []
    for i in range(freq_c):
        if i == freq_c - 1:
            lowpass.append(np.ones_like(D))
        else:
            cutoff = (i + 1) / freq_c * d_max
            lowpass.append(1.0 / (1.0 + (D / cutoff) ** (2 * order)))
    lp = np.stack(lowpass)
    masks = lp.copy()
    masks[1:] -= lp[:-1]                   # bands partition the spectrum
    if reverse:
        masks = masks[::-1]
    return np.ascontiguousarray(masks.astype(np.float32))


def split_freq_bands(y, freq_c, order=2, reverse=False):
    """y: (B, C, H, W) -> (freq_c, B, C, H, W) frequency bands."""
    _, _, H, W = y.shape
    masks = jnp.asarray(_butterworth_band_masks(H, W, freq_c, order, reverse))
    Yf = jnp.fft.fft2(y.astype(jnp.float32), axes=(-2, -1))        # (B,C,H,W)
    # TODO(synk): for very large images, scan over bands one at a time to
    # avoid materializing all F complex products at once.
    bands = jnp.real(
        jnp.fft.ifft2(Yf[None] * masks[:, None, None], axes=(-2, -1))
    ).astype(jnp.float32)                                           # (F,B,C,H,W)
    return bands


# ----------------------------------------------------------------------------
# Full loss: Charbonnier(x_up, Y) + sum_i Charbonnier(X_f[i], Y_f[i])
# (sum of per-pair means, exactly as in the PyTorch module)
# ----------------------------------------------------------------------------
def l1c_deep_supervision_frequency_division_loss(X, Y, freq_c=8,
                                                 freq_order="l2h", eps=EPS):
    # Forward pass only.  TODO(synk): a custom_vjp backward kernel
    # (d/dx = (x-y)/sqrt((x-y)^2+eps)/N) is required before jax.grad use.
    if freq_order not in ("l2h", "h2l"):
        raise ValueError("freq_order must be 'l2h' or 'h2l'")
    x_up, X_f = X

    if isinstance(X_f, (list, tuple)):
        x_stack = jnp.stack(list(X_f), axis=0)      # one copy, enables fused call
    else:
        x_stack = X_f                               # already (F,B,C,H,W)
    bands = split_freq_bands(Y, freq_c, reverse=(freq_order == "h2l"))

    n_pairs = min(x_stack.shape[0], bands.shape[0])  # mirrors zip() truncation
    x_stack = x_stack[:n_pairs]
    bands = bands[:n_pairs]

    per_pair = jnp.float32(Y.size)
    # All pairs share the same element count, so
    #   sum of per-pair means == grand sum / per-pair element count.
    loss = _charb_grand_sum(x_up, Y, eps) / per_pair
    loss = loss + _charb_grand_sum(x_stack, bands, eps) / per_pair
    return loss


# ----------------------------------------------------------------------------
# Demo / smoke test
# ----------------------------------------------------------------------------
if __name__ == "__main__":
    B, C, H, W = 2, 3, 16, 16   # color_channel = 3
    FREQ_C = 8

    key = jax.random.PRNGKey(0)
    k_up, k_y, *k_bands = jax.random.split(key, 2 + FREQ_C)

    x_up = jax.random.normal(k_up, (B, C, H, W), dtype=jnp.float32)
    X_f = [
        jax.random.normal(k_bands[i], (B, C, H, W), dtype=jnp.float32)
        for i in range(FREQ_C)
    ]
    Y = jax.random.normal(k_y, (B, C, H, W), dtype=jnp.float32)

    loss_fn = jax.jit(functools.partial(
        l1c_deep_supervision_frequency_division_loss,
        freq_c=FREQ_C, freq_order="l2h"))

    loss = jax.block_until_ready(loss_fn((x_up, X_f), Y))

    # Pure-JAX reference (same band split) for a correctness sanity check.
    def _ref_loss(x_up, X_f, Y):
        bands = split_freq_bands(Y, FREQ_C)
        l = jnp.mean(jnp.sqrt((x_up - Y) ** 2 + EPS))
        for i in range(FREQ_C):
            l = l + jnp.mean(jnp.sqrt((X_f[i] - bands[i]) ** 2 + EPS))
        return l

    ref = jax.block_until_ready(jax.jit(_ref_loss)(x_up, X_f, Y))

    assert loss.shape == () and bool(jnp.isfinite(loss))
    assert abs(float(loss) - float(ref)) <= 1e-3 * max(1.0, abs(float(ref))), (
        float(loss), float(ref))
    print("KERNEL_OK")
</pallas_src>

<mosaic_0001>
module attributes {stable_mosaic.version = 11 : i64} {
  func.func @kernel(%arg0: i32, %arg1: i32, %arg2: memref<96x128xf32, #tpu.memory_space<vmem>>, %arg3: memref<96x128xf32, #tpu.memory_space<vmem>>, %arg4: memref<1x8x128xf32, #tpu.memory_space<vmem>>) attributes {dimension_semantics = [#tpu.dimension_semantics<parallel>, #tpu.dimension_semantics<arbitrary>], iteration_bounds = array<i64: 1, 1>, scalar_prefetch = 0 : i64, scratch_operands = 0 : i64, tpu.core_type = #tpu.core_type<tc>, window_params = [{transform_indices = @transform_0, window_bounds = array<i64: 96, 128>}, {transform_indices = @transform_1, window_bounds = array<i64: 96, 128>}, {transform_indices = @transform_2, window_bounds = array<i64: 1, 8, 128>}]} {
    %c0_i32 = arith.constant 0 : i32
    %0 = arith.cmpi eq, %arg1, %c0_i32 : i32
    %1 = arith.extui %0 : i1 to i32
    %c0_i32_0 = arith.constant 0 : i32
    %2 = arith.cmpi ne, %1, %c0_i32_0 : i32
    scf.if %2 {
      %cst_11 = arith.constant 0.000000e+00 : f32
      %18 = vector.broadcast %cst_11 : f32 to vector<1x8x128xf32>
      %c0_12 = arith.constant 0 : index
      %c0_13 = arith.constant 0 : index
      %c0_14 = arith.constant 0 : index
      %19 = vector.load %arg4[%c0_12, %c0_13, %c0_14] : memref<1x8x128xf32, #tpu.memory_space<vmem>>, vector<1x8x128xf32>
      tpu.vector_store %arg4[%c0_12, %c0_13, %c0_14], %18 {strides = array<i32>} : memref<1x8x128xf32, #tpu.memory_space<vmem>>, vector<1x8x128xf32>,
    } else {
    }
    %c0 = arith.constant 0 : index
    %c0_1 = arith.constant 0 : index
    %3 = vector.load %arg2[%c0, %c0_1] : memref<96x128xf32, #tpu.memory_space<vmem>>, vector<96x128xf32>
    %c0_2 = arith.constant 0 : index
    %c0_3 = arith.constant 0 : index
    %4 = vector.load %arg3[%c0_2, %c0_3] : memref<96x128xf32, #tpu.memory_space<vmem>>, vector<96x128xf32>
    %5 = arith.subf %3, %4 : vector<96x128xf32>
    %6 = arith.mulf %5, %5 : vector<96x128xf32>
    %cst = arith.constant 9.99999997E-7 : f32
    %7 = vector.broadcast %cst : f32 to vector<96x128xf32>
    %8 = arith.addf %6, %7 : vector<96x128xf32>
    %9 = math.sqrt %8 : vector<96x128xf32>
    %c0_4 = arith.constant 0 : index
    %c0_5 = arith.constant 0 : index
    %c0_6 = arith.constant 0 : index
    %10 = vector.load %arg4[%c0_4, %c0_5, %c0_6] : memref<1x8x128xf32, #tpu.memory_space<vmem>>, vector<1x8x128xf32>
    %11 = vector.shape_cast %10 : vector<1x8x128xf32> to vector<8x128xf32>
    %12 = vector.shape_cast %9 : vector<96x128xf32> to vector<12x8x128xf32>
    %cst_7 = arith.constant dense<0.000000e+00> : vector<8x128xf32>
    %13 = vector.multi_reduction <add>, %12, %cst_7 [0] : vector<12x8x128xf32> to vector<8x128xf32>
    %14 = arith.addf %11, %13 : vector<8x128xf32>
    %c0_8 = arith.constant 0 : index
    %c0_9 = arith.constant 0 : index
    %c0_10 = arith.constant 0 : index
    %15 = vector.load %arg4[%c0_8, %c0_9, %c0_10] : memref<1x8x128xf32, #tpu.memory_space<vmem>>, vector<1x8x128xf32>
    %16 = vector.shape_cast %15 : vector<1x8x128xf32> to vector<8x128xf32>
    %17 = vector.shape_cast %14 : vector<8x128xf32> to vector<1x8x128xf32>
    tpu.vector_store %arg4[%c0_8, %c0_9, %c0_10], %17 {strides = array<i32>} : memref<1x8x128xf32, #tpu.memory_space<vmem>>, vector<1x8x128xf32>,
    return
  }
  func.func @transform_0(%arg0: i32, %arg1: i32) -> (i32, i32) {
    %c1_i32 = arith.constant 1 : i32
    %0 = arith.muli %arg0, %c1_i32 : i32
    %1 = arith.addi %0, %arg1 : i32
    %c0_i32 = arith.constant 0 : i32
    %c0_i32_0 = arith.constant 0 : i32
    return %1, %c0_i32 : i32, i32
  }
  func.func @transform_1(%arg0: i32, %arg1: i32) -> (i32, i32) {
    %c1_i32 = arith.constant 1 : i32
    %0 = arith.muli %arg0, %c1_i32 : i32
    %1 = arith.addi %0, %arg1 : i32
    %c0_i32 = arith.constant 0 : i32
    %c0_i32_0 = arith.constant 0 : i32
    return %1, %c0_i32 : i32, i32
  }
  func.func @transform_2(%arg0: i32, %arg1: i32) -> (i32, i32, i32) {
    %c0_i32 = arith.constant 0 : i32
    %c0_i32_0 = arith.constant 0 : i32
    %c0_i32_1 = arith.constant 0 : i32
    return %arg0, %c0_i32, %c0_i32_0 : i32, i32, i32
  }
}

module attributes {stable_mosaic.version = 11 : i64} {
  func.func @kernel(%arg0: i32, %arg1: i32, %arg2: memref<8x128xf32, #tpu.memory_space<vmem>>, %arg3: memref<8x128xf32, #tpu.memory_space<vmem>>, %arg4: memref<1x8x128xf32, #tpu.memory_space<vmem>>) attributes {dimension_semantics = [#tpu.dimension_semantics<parallel>, #tpu.dimension_semantics<arbitrary>], iteration_bounds = array<i64: 2, 1>, scalar_prefetch = 0 : i64, scratch_operands = 0 : i64, tpu.core_type = #tpu.core_type<tc>, window_params = [{transform_indices = @transform_0, window_bounds = array<i64: 8, 128>}, {transform_indices = @transform_1, window_bounds = array<i64: 8, 128>}, {transform_indices = @transform_2, window_bounds = array<i64: 1, 8, 128>}]} {
    %c0_i32 = arith.constant 0 : i32
    %0 = arith.cmpi eq, %arg1, %c0_i32 : i32
    %1 = arith.extui %0 : i1 to i32
    %c0_i32_0 = arith.constant 0 : i32
    %2 = arith.cmpi ne, %1, %c0_i32_0 : i32
    scf.if %2 {
      %cst_8 = arith.constant 0.000000e+00 : f32
      %18 = vector.broadcast %cst_8 : f32 to vector<1x8x128xf32>
      %c0_9 = arith.constant 0 : index
      %c0_10 = arith.constant 0 : index
      %c0_11 = arith.constant 0 : index
      %19 = vector.load %arg4[%c0_9, %c0_10, %c0_11] : memref<1x8x128xf32, #tpu.memory_space<vmem>>, vector<1x8x128xf32>
      tpu.vector_store %arg4[%c0_9, %c0_10, %c0_11], %18 {strides = array<i32>} : memref<1x8x128xf32, #tpu.memory_space<vmem>>, vector<1x8x128xf32>,
    } else {
    }
    %c0 = arith.constant 0 : index
    %c0_1 = arith.constant 0 : index
    %3 = vector.load %arg2[%c0, %c0_1] : memref<8x128xf32, #tpu.memory_space<vmem>>, vector<8x128xf32>
    %c0_2 = arith.constant 0 : index
    %c0_3 = arith.constant 0 : index
    %4 = vector.load %arg3[%c0_2, %c0_3] : memref<8x128xf32, #tpu.memory_space<vmem>>, vector<8x128xf32>
    %5 = arith.subf %3, %4 : vector<8x128xf32>
    %6 = arith.mulf %5, %5 : vector<8x128xf32>
    %cst = arith.constant 9.99999997E-7 : f32
    %7 = vector.broadcast %cst : f32 to vector<8x128xf32>
    %8 = arith.addf %6, %7 : vector<8x128xf32>
    %9 = math.sqrt %8 : vector<8x128xf32>
    %c1_i32 = arith.constant 1 : i32
    %10 = arith.muli %arg0, %c1_i32 : i32
    %11 = arith.addi %10, %arg1 : i32
    %c1_i32_4 = arith.constant 1 : i32
    %12 = arith.cmpi slt, %11, %c1_i32_4 : i32
    %13 = arith.extui %12 : i1 to i32
    %c0_i32_5 = arith.constant 0 : i32
    %14 = arith.cmpi ne, %13, %c0_i32_5 : i32
    scf.if %14 {
      %c0_8 = arith.constant 0 : index
      %c0_9 = arith.constant 0 : index
      %c0_10 = arith.constant 0 : index
      %18 = vector.load %arg4[%c0_8, %c0_9, %c0_10] : memref<1x8x128xf32, #tpu.memory_space<vmem>>, vector<1x8x128xf32>
      %19 = vector.shape_cast %18 : vector<1x8x128xf32> to vector<8x128xf32>
      %20 = arith.addf %19, %9 : vector<8x128xf32>
      %c0_11 = arith.constant 0 : index
      %c0_12 = arith.constant 0 : index
      %c0_13 = arith.constant 0 : index
      %21 = vector.load %arg4[%c0_11, %c0_12, %c0_13] : memref<1x8x128xf32, #tpu.memory_space<vmem>>, vector<1x8x128xf32>
      %22 = vector.shape_cast %21 : vector<1x8x128xf32> to vector<8x128xf32>
      %23 = vector.shape_cast %20 : vector<8x128xf32> to vector<1x8x128xf32>
      tpu.vector_store %arg4[%c0_11, %c0_12, %c0_13], %23 {strides = array<i32>} : memref<1x8x128xf32, #tpu.memory_space<vmem>>, vector<1x8x128xf32>,
    } else {
    }
    %c1_i32_6 = arith.constant 1 : i32
    %15 = arith.cmpi eq, %11, %c1_i32_6 : i32
    %16 = arith.extui %15 : i1 to i32
    %c0_i32_7 = arith.constant 0 : i32
    %17 = arith.cmpi ne, %16, %c0_i32_7 : i32
    scf.if %17 {
      %18 = tpu.iota {dimensions = array<i32: 0>} : vector<8x128xi32>
      %19 = tpu.iota {dimensions = array<i32: 1>} : vector<8x128xi32>
      %c128_i32 = arith.constant 128 : i32
      %20 = vector.broadcast %c128_i32 : i32 to vector<8x128xi32>
      %21 = arith.muli %18, %20 : vector<8x128xi32>
      %22 = arith.addi %21, %19 : vector<8x128xi32>
      %c0_8 = arith.constant 0 : index
      %c0_9 = arith.constant 0 : index
      %c0_10 = arith.constant 0 : index
      %23 = vector.load %arg4[%c0_8, %c0_9, %c0_10] : memref<1x8x128xf32, #tpu.memory_space<vmem>>, vector<1x8x128xf32>
      %24 = vector.shape_cast %23 : vector<1x8x128xf32> to vector<8x128xf32>
      %c512_i32 = arith.constant 512 : i32
      %25 = vector.broadcast %c512_i32 : i32 to vector<8x128xi32>
      %26 = arith.cmpi slt, %22, %25 : vector<8x128xi32>
      %cst_11 = arith.constant 0.000000e+00 : f32
      %27 = vector.broadcast %cst_11 : f32 to vector<8x128xf32>
      %28 = arith.select %26, %9, %27 : vector<8x128xi1>, vector<8x128xf32>
      %29 = arith.addf %24, %28 : vector<8x128xf32>
      %c0_12 = arith.constant 0 : index
      %c0_13 = arith.constant 0 : index
      %c0_14 = arith.constant 0 : index
      %30 = vector.load %arg4[%c0_12, %c0_13, %c0_14] : memref<1x8x128xf32, #tpu.memory_space<vmem>>, vector<1x8x128xf32>
      %31 = vector.shape_cast %30 : vector<1x8x128xf32> to vector<8x128xf32>
      %32 = vector.shape_cast %29 : vector<8x128xf32> to vector<1x8x128xf32>
      tpu.vector_store %arg4[%c0_12, %c0_13, %c0_14], %32 {strides = array<i32>} : memref<1x8x128xf32, #tpu.memory_space<vmem>>, vector<1x8x128xf32>,
    } else {
    }
    return
  }
  func.func @transform_0(%arg0: i32, %arg1: i32) -> (i32, i32) {
    %c1_i32 = arith.constant 1 : i32
    %0 = arith.muli %arg0, %c1_i32 : i32
    %1 = arith.addi %0, %arg1 : i32
    %c0_i32 = arith.constant 0 : i32
    %c0_i32_0 = arith.constant 0 : i32
    return %1, %c0_i32 : i32, i32
  }
  func.func @transform_1(%arg0: i32, %arg1: i32) -> (i32, i32) {
    %c1_i32 = arith.constant 1 : i32
    %0 = arith.muli %arg0, %c1_i32 : i32
    %1 = arith.addi %0, %arg1 : i32
    %c0_i32 = arith.constant 0 : i32
    %c0_i32_0 = arith.constant 0 : i32
    return %1, %c0_i32 : i32, i32
  }
  func.func @transform_2(%arg0: i32, %arg1: i32) -> (i32, i32, i32) {
    %c0_i32 = arith.constant 0 : i32
    %c0_i32_0 = arith.constant 0 : i32
    %c0_i32_1 = arith.constant 0 : i32
    return %arg0, %c0_i32, %c0_i32_0 : i32, i32, i32
  }
}

</mosaic_0001>

<llo_original>
// kernel: l1c_deep_supervision_frequency_division_loss.3
$region0: #{l1c_deep_supervision_frequency_division_loss.3}
  #allocation0 [shape = 'u32[]', space=smem, size = 0x4, offset = 0x4, fixed_abs, tag = 'smem constant byte address 0x4 - core index']
  #allocation1 [shape = 'u32[72,128]{1,0:T(1,128)}', space=vmem, size = 0x9000, scoped, tag = 'internal scratch']
  %s0 = inlined_call_operand.vmem [shape: f32[96,128], index: 0, kind: input, shape index: {}]
  %s1 = inlined_call_operand.vmem [shape: f32[96,128], index: 1, kind: input, shape index: {}]
  %s2 = inlined_call_operand.vmem [shape: f32[1,8,128], index: 2, kind: output, shape index: {}]
  %s3 = sld [smem:[#allocation0]]
  $region22: #{l1c_deep_supervision_frequency_division_loss.3} parent=0
    _
  %s5 = ssub.s32 1, %s3
  %s6 = scalar_select 0, %s5, %s3
  // Predicated region
  $region2: #{l1c_deep_supervision_frequency_division_loss.3} parent=0 // pred_check
    _
  $region3: #{l1c_deep_supervision_frequency_division_loss.3} parent=0 // pred_check_branch
    %8 = sbr.rel (0) target = $region5
  $region4: #{l1c_deep_supervision_frequency_division_loss.3} parent=0 // pred_region
    %s9 = sadd.s32 0, 0
    %s10 = smul.u32 12, %s9
    %p11 = scmp.lt.s32.totalorder %s10, 11
    %s12 = scalar_select %p11, %s10, 11
    %s13 = smul.addr %s12, 8
    %s14 = scalar_lea.vmem %s0, %s13
    %s15 = sadd.s32 0, 0
    %s16 = smul.u32 12, %s15
  $region5: #{l1c_deep_supervision_frequency_division_loss.3} parent=0 // pred_fallthru
    _
  // Predicated region
  $region6: #{l1c_deep_supervision_frequency_division_loss.3} parent=0 // pred_check
    _
  $region7: #{l1c_deep_supervision_frequency_division_loss.3} parent=0 // pred_check_branch
    %18 = sbr.rel (0) target = $region9
  $region8: #{l1c_deep_supervision_frequency_division_loss.3} parent=0 // pred_region
    %s19 = sadd.s32 0, 0
    %s20 = smul.u32 12, %s19
    %p21 = scmp.lt.s32.totalorder %s20, 11
    %s22 = scalar_select %p21, %s20, 11
    %s23 = smul.addr %s22, 8
    %s24 = scalar_lea.vmem %s1, %s23
    %s25 = sadd.s32 0, 0
    %s26 = smul.u32 12, %s25
  $region9: #{l1c_deep_supervision_frequency_division_loss.3} parent=0 // pred_fallthru
    _
  %s27 = sadd.s32 0, 0
  %s28 = smul.u32 12, %s27
  %p29 = scmp.lt.s32.totalorder %s28, 11
  %s30 = scalar_select %p29, %s28, 11
  %s31 = smul.addr %s30, 8
  %s32 = scalar_lea.vmem %s0, %s31
  %s33 = sadd.s32 0, 0
  %s34 = smul.u32 12, %s33
  %p35 = scmp.lt.s32.totalorder %s34, 11
  %s36 = scalar_select %p35, %s34, 11
  %s37 = smul.addr %s36, 8
  %s38 = scalar_lea.vmem %s1, %s37
  %s39 = sadd.s32 0, 0
  %s40 = smul.u32 12, %s39
  %p41 = scmp.lt.s32.totalorder %s40, 11
  %s42 = scalar_select %p41, %s40, 11
  %s43 = smul.addr %s42, 8
  %s44 = scalar_lea.vmem %s0, %s43
  %s45 = sadd.s32 0, 0
  %s46 = smul.u32 12, %s45
  %s47 = sadd.s32 0, 0
  %s48 = smul.u32 12, %s47
  %p49 = scmp.lt.s32.totalorder %s48, 11
  %s50 = scalar_select %p49, %s48, 11
  %s51 = smul.addr %s50, 8
  %s52 = scalar_lea.vmem %s1, %s51
  %s53 = sadd.s32 0, 0
  %s54 = smul.u32 12, %s53
  %p55 = scmp.eq.s32.totalorder 0, 0
  // Predicated region
  $region10: #{l1c_deep_supervision_frequency_division_loss.3} parent=0 // pred_check
    %p56 = pneg %p55
  $region11: #{l1c_deep_supervision_frequency_division_loss.3} parent=0 // pred_check_branch
    %58 = sbr.rel (%p56) target = $region13
  $region12: #{l1c_deep_supervision_frequency_division_loss.3} parent=0 // pred_region
    %59 = vst [vmem:[%s2] sm:$0xff] 0.0
  $region13: #{l1c_deep_supervision_frequency_division_loss.3} parent=0 // pred_fallthru
    _
  %v60 = vld [vmem:[%s44] sm:$0xff]
  %v61 = vld [vmem:[%s44 + $0x8] sm:$0xff]
  %v62 = vld [vmem:[%s44 + $0x10] sm:$0xff]
  %v63 = vld [vmem:[%s44 + $0x18] sm:$0xff]
  %v64 = vld [vmem:[%s44 + $0x20] sm:$0xff]
  %v65 = vld [vmem:[%s44 + $0x28] sm:$0xff]
  %v66 = vld [vmem:[%s44 + $0x30] sm:$0xff]
  %v67 = vld [vmem:[%s44 + $0x38] sm:$0xff]
  %v68 = vld [vmem:[%s44 + $0x40] sm:$0xff]
  %v69 = vld [vmem:[%s44 + $0x48] sm:$0xff]
  %v70 = vld [vmem:[%s44 + $0x50] sm:$0xff]
  %v71 = vld [vmem:[%s44 + $0x58] sm:$0xff]
  %v72 = vld [vmem:[%s52] sm:$0xff]
  %v73 = vld [vmem:[%s52 + $0x8] sm:$0xff]
  %v74 = vld [vmem:[%s52 + $0x10] sm:$0xff]
  %v75 = vld [vmem:[%s52 + $0x18] sm:$0xff]
  %v76 = vld [vmem:[%s52 + $0x20] sm:$0xff]
  %v77 = vld [vmem:[%s52 + $0x28] sm:$0xff]
  %v78 = vld [vmem:[%s52 + $0x30] sm:$0xff]
  %v79 = vld [vmem:[%s52 + $0x38] sm:$0xff]
  %v80 = vld [vmem:[%s52 + $0x40] sm:$0xff]
  %v81 = vld [vmem:[%s52 + $0x48] sm:$0xff]
  %v82 = vld [vmem:[%s52 + $0x50] sm:$0xff]
  %v83 = vld [vmem:[%s52 + $0x58] sm:$0xff]
  %v84 = vsub.f32 %v60, %v72
  %v85 = vsub.f32 %v61, %v73
  %v86 = vsub.f32 %v62, %v74
  %v87 = vsub.f32 %v63, %v75
  %v88 = vsub.f32 %v64, %v76
  %v89 = vsub.f32 %v65, %v77
  %v90 = vsub.f32 %v66, %v78
  %v91 = vsub.f32 %v67, %v79
  %v92 = vsub.f32 %v68, %v80
  %v93 = vsub.f32 %v69, %v81
  %v94 = vsub.f32 %v70, %v82
  %v95 = vsub.f32 %v71, %v83
  %v96 = vmul.f32 %v84, %v84
  %v97 = vmul.f32 %v85, %v85
  %v98 = vmul.f32 %v86, %v86
  %v99 = vmul.f32 %v87, %v87
  %v100 = vmul.f32 %v88, %v88
  %v101 = vmul.f32 %v89, %v89
  %v102 = vmul.f32 %v90, %v90
  %v103 = vmul.f32 %v91, %v91
  %v104 = vmul.f32 %v92, %v92
  %v105 = vmul.f32 %v93, %v93
  %v106 = vmul.f32 %v94, %v94
  %v107 = vmul.f32 %v95, %v95
  %v108 = vadd.f32 %v96, 1e-06
  %v109 = vadd.f32 %v97, 1e-06
  %v110 = vadd.f32 %v98, 1e-06
  %v111 = vadd.f32 %v99, 1e-06
  %v112 = vadd.f32 %v100, 1e-06
  %v113 = vadd.f32 %v101, 1e-06
  %v114 = vadd.f32 %v102, 1e-06
  %v115 = vadd.f32 %v103, 1e-06
  %v116 = vadd.f32 %v104, 1e-06
  %v117 = vadd.f32 %v105, 1e-06
  %v118 = vadd.f32 %v106, 1e-06
  %v119 = vadd.f32 %v107, 1e-06
  %v120 = vrsqrt.pop %v108
  %v121 = vmul.f32 %v120, %v108
  %v122 = vmul.f32 %v121, %v120
  %v123 = vmul.f32 0.5, %v122
  %v124 = vsub.f32 1.5, %v123
  %v125 = vmul.f32 %v120, %v124
  %v126 = vmul.f32 %v108, %v125
  %vm127 = vcmp.eq.f32.partialorder %v108, inf
  %v128 = vsel %vm127, %v108, %v126
  %vm129 = vcmp.eq.f32.partialorder %v108, 0.0
  %v130 = vand.u32 %v108, 2147483648
  %v131 = vsel %vm129, %v130, %v128
  %v132 = vrsqrt.pop %v109
  %v133 = vmul.f32 %v132, %v109
  %v134 = vmul.f32 %v133, %v132
  %v135 = vmul.f32 0.5, %v134
  %v136 = vsub.f32 1.5, %v135
  %v137 = vmul.f32 %v132, %v136
  %v138 = vmul.f32 %v109, %v137
  %vm139 = vcmp.eq.f32.partialorder %v109, inf
  %v140 = vsel %vm139, %v109, %v138
  %vm141 = vcmp.eq.f32.partialorder %v109, 0.0
  %v142 = vand.u32 %v109, 2147483648
  %v143 = vsel %vm141, %v142, %v140
  %v144 = vrsqrt.pop %v110
  %v145 = vmul.f32 %v144, %v110
  %v146 = vmul.f32 %v145, %v144
  %v147 = vmul.f32 0.5, %v146
  %v148 = vsub.f32 1.5, %v147
  %v149 = vmul.f32 %v144, %v148
  %v150 = vmul.f32 %v110, %v149
  %vm151 = vcmp.eq.f32.partialorder %v110, inf
  %v152 = vsel %vm151, %v110, %v150
  %vm153 = vcmp.eq.f32.partialorder %v110, 0.0
  %v154 = vand.u32 %v110, 2147483648
  %v155 = vsel %vm153, %v154, %v152
  %v156 = vrsqrt.pop %v111
  %v157 = vmul.f32 %v156, %v111
  %v158 = vmul.f32 %v157, %v156
  %v159 = vmul.f32 0.5, %v158
  %v160 = vsub.f32 1.5, %v159
  %v161 = vmul.f32 %v156, %v160
  %v162 = vmul.f32 %v111, %v161
  %vm163 = vcmp.eq.f32.partialorder %v111, inf
  %v164 = vsel %vm163, %v111, %v162
  %vm165 = vcmp.eq.f32.partialorder %v111, 0.0
  %v166 = vand.u32 %v111, 2147483648
  %v167 = vsel %vm165, %v166, %v164
  %v168 = vrsqrt.pop %v112
  %v169 = vmul.f32 %v168, %v112
  %v170 = vmul.f32 %v169, %v168
  %v171 = vmul.f32 0.5, %v170
  %v172 = vsub.f32 1.5, %v171
  %v173 = vmul.f32 %v168, %v172
  %v174 = vmul.f32 %v112, %v173
  %vm175 = vcmp.eq.f32.partialorder %v112, inf
  %v176 = vsel %vm175, %v112, %v174
  %vm177 = vcmp.eq.f32.partialorder %v112, 0.0
  %v178 = vand.u32 %v112, 2147483648
  %v179 = vsel %vm177, %v178, %v176
  %v180 = vrsqrt.pop %v113
  %v181 = vmul.f32 %v180, %v113
  %v182 = vmul.f32 %v181, %v180
  %v183 = vmul.f32 0.5, %v182
  %v184 = vsub.f32 1.5, %v183
  %v185 = vmul.f32 %v180, %v184
  %v186 = vmul.f32 %v113, %v185
  %vm187 = vcmp.eq.f32.partialorder %v113, inf
  %v188 = vsel %vm187, %v113, %v186
  %vm189 = vcmp.eq.f32.partialorder %v113, 0.0
  %v190 = vand.u32 %v113, 2147483648
  %v191 = vsel %vm189, %v190, %v188
  %v192 = vrsqrt.pop %v114
  %v193 = vmul.f32 %v192, %v114
  %v194 = vmul.f32 %v193, %v192
  %v195 = vmul.f32 0.5, %v194
  %v196 = vsub.f32 1.5, %v195
  %v197 = vmul.f32 %v192, %v196
  %v198 = vmul.f32 %v114, %v197
  %vm199 = vcmp.eq.f32.partialorder %v114, inf
  %v200 = vsel %vm199, %v114, %v198
  %vm201 = vcmp.eq.f32.partialorder %v114, 0.0
  %v202 = vand.u32 %v114, 2147483648
  %v203 = vsel %vm201, %v202, %v200
  %v204 = vrsqrt.pop %v115
  %v205 = vmul.f32 %v204, %v115
  %v206 = vmul.f32 %v205, %v204
  %v207 = vmul.f32 0.5, %v206
  %v208 = vsub.f32 1.5, %v207
  %v209 = vmul.f32 %v204, %v208
  %v210 = vmul.f32 %v115, %v209
  %vm211 = vcmp.eq.f32.partialorder %v115, inf
  %v212 = vsel %vm211, %v115, %v210
  %vm213 = vcmp.eq.f32.partialorder %v115, 0.0
  %v214 = vand.u32 %v115, 2147483648
  %v215 = vsel %vm213, %v214, %v212
  %v216 = vrsqrt.pop %v116
  %v217 = vmul.f32 %v216, %v116
  %v218 = vmul.f32 %v217, %v216
  %v219 = vmul.f32 0.5, %v218
  %v220 = vsub.f32 1.5, %v219
  %v221 = vmul.f32 %v216, %v220
  %v222 = vmul.f32 %v116, %v221
  %vm223 = vcmp.eq.f32.partialorder %v116, inf
  %v224 = vsel %vm223, %v116, %v222
  %vm225 = vcmp.eq.f32.partialorder %v116, 0.0
  %v226 = vand.u32 %v116, 2147483648
  %v227 = vsel %vm225, %v226, %v224
  %v228 = vrsqrt.pop %v117
  %v229 = vmul.f32 %v228, %v117
  %v230 = vmul.f32 %v229, %v228
  %v231 = vmul.f32 0.5, %v230
  %v232 = vsub.f32 1.5, %v231
  %v233 = vmul.f32 %v228, %v232
  %v234 = vmul.f32 %v117, %v233
  %vm235 = vcmp.eq.f32.partialorder %v117, inf
  %v236 = vsel %vm235, %v117, %v234
  %vm237 = vcmp.eq.f32.partialorder %v117, 0.0
  %v238 = vand.u32 %v117, 2147483648
  %v239 = vsel %vm237, %v238, %v236
  %v240 = vrsqrt.pop %v118
  %v241 = vmul.f32 %v240, %v118
  %v242 = vmul.f32 %v241, %v240
  %v243 = vmul.f32 0.5, %v242
  %v244 = vsub.f32 1.5, %v243
  %v245 = vmul.f32 %v240, %v244
  %v246 = vmul.f32 %v118, %v245
  %vm247 = vcmp.eq.f32.partialorder %v118, inf
  %v248 = vsel %vm247, %v118, %v246
  %vm249 = vcmp.eq.f32.partialorder %v118, 0.0
  %v250 = vand.u32 %v118, 2147483648
  %v251 = vsel %vm249, %v250, %v248
  %v252 = vrsqrt.pop %v119
  %v253 = vmul.f32 %v252, %v119
  %v254 = vmul.f32 %v253, %v252
  %v255 = vmul.f32 0.5, %v254
  %v256 = vsub.f32 1.5, %v255
  %v257 = vmul.f32 %v252, %v256
  %v258 = vmul.f32 %v119, %v257
  %vm259 = vcmp.eq.f32.partialorder %v119, inf
  %v260 = vsel %vm259, %v119, %v258
  %vm261 = vcmp.eq.f32.partialorder %v119, 0.0
  %v262 = vand.u32 %v119, 2147483648
  %v263 = vsel %vm261, %v262, %v260
  %v264 = vld [vmem:[%s2] sm:$0xff]
  %v265 = vadd.f32 %v131, %v143
  %v266 = vadd.f32 %v265, %v155
  %v267 = vadd.f32 %v266, %v167
  %v268 = vadd.f32 %v267, %v179
  %v269 = vadd.f32 %v268, %v191
  %v270 = vadd.f32 %v269, %v203
  %v271 = vadd.f32 %v270, %v215
  %v272 = vadd.f32 %v271, %v227
  %v273 = vadd.f32 %v272, %v239
  %v274 = vadd.f32 %v273, %v251
  %v275 = vadd.f32 %v274, %v263
  %v276 = vadd.f32 %v264, %v275
  %277 = vst [vmem:[%s2] sm:$0xff] %v276
  // Predicated region
  $region14: #{l1c_deep_supervision_frequency_division_loss.3} parent=0 // pred_check
    _
  $region15: #{l1c_deep_supervision_frequency_division_loss.3} parent=0 // pred_check_branch
    %279 = sbr.rel (0) target = $region17
  $region16: #{l1c_deep_supervision_frequency_division_loss.3} parent=0 // pred_region
    _
  $region17: #{l1c_deep_supervision_frequency_division_loss.3} parent=0 // pred_fallthru
    _
  // Predicated region
  $region18: #{l1c_deep_supervision_frequency_division_loss.3} parent=0 // pred_check
    _
  $region19: #{l1c_deep_supervision_frequency_division_loss.3} parent=0 // pred_check_branch
    %281 = sbr.rel (0) target = $region21
  $region20: #{l1c_deep_supervision_frequency_division_loss.3} parent=0 // pred_region
    _
  $region21: #{l1c_deep_supervision_frequency_division_loss.3} parent=0 // pred_fallthru
    _

// kernel: l1c_deep_supervision_frequency_division_loss.2
$region0: #{l1c_deep_supervision_frequency_division_loss.2}
  #allocation0 [shape = 'u32[]', space=smem, size = 0x4, offset = 0x4, fixed_abs, tag = 'smem constant byte address 0x4 - core index']
  #allocation1 [shape = 'u32[72,128]{1,0:T(1,128)}', space=vmem, size = 0x9000, scoped, tag = 'internal scratch']
  %s0 = inlined_call_operand.vmem [shape: f32[12,128], index: 0, kind: input, shape index: {}]
  %s1 = inlined_call_operand.vmem [shape: f32[12,128], index: 1, kind: input, shape index: {}]
  %s2 = inlined_call_operand.vmem [shape: f32[2,8,128], index: 2, kind: output, shape index: {}]
  %s3 = sld [smem:[#allocation0]]
  $region53: #{l1c_deep_supervision_frequency_division_loss.2} parent=0
    _
  %s5 = ssub.s32 1, %s3
  %s6 = scalar_select 0, %s5, %s3
  loop: start=0, step=1, limit=4
  $region2: #{l1c_deep_supervision_frequency_division_loss.2} parent=0 // loop_pre_header
    _
  $region3: #{l1c_deep_supervision_frequency_division_loss.2} parent=0 // loop_header
    %s8 = sphi 0, %s12
    %p9 = scmp.ge.s32.totalorder %s8, 4
    %s15 = sphi 0, %s27
    %s16 = sphi 0, %s23
    %s17 = sphi 0, %s15
    %s18 = sphi 0, %s16
    %s19 = sphi 0, %s17
    %s20 = sphi 0, %s18
    %s32 = sphi 0, %s34
    %s35 = sphi 0, %s32
    %s36 = sphi 0, %s35
    %s52 = sphi 0, %s36
    %s60 = sphi 0, %s62
    %s63 = sphi 0, %s60
    %s64 = sphi 0, %s63
    %s80 = sphi 0, %s64
    %s86 = sphi 0, %s88
    %s89 = sphi 0, %s86
    %s90 = sphi 0, %s89
    %s106 = sphi 0, %s90
  $region4: #{l1c_deep_supervision_frequency_division_loss.2} parent=0 // loop_header_branch
    %11 = sbr.rel (%p9) target = $region8
  $region5: #{l1c_deep_supervision_frequency_division_loss.2} parent=0 // loop_body
    %s13 = ssub.s32 %s8, 1
    %s14 = ssub.s32 %s8, 2
    %s21 = sadd.s32 1, %s16
    %p22 = scmp.ge.s32.totalorder %s21, 1
    %s23 = scalar_select %p22, 0, %s21
    %s24 = sadd.s32 1, %s15
    %s25 = scalar_select %p22, %s24, %s15
    %p26 = scmp.ge.s32.totalorder %s25, 2
    %s27 = scalar_select %p26, 0, %s25
    %s28 = sadd.s32 %s15, %s16
    %s29 = sadd.s32 %s27, %s23
    %s30 = ssub.s32 %s28, %s29
    %p31 = scmp.eq.s32.totalorder %s30, 0
    %s33 = sadd.s32 %s32, 1
    %s34 = scalar_select %p31, %s32, %s33
    %p37 = pneg %p31
    %p38 = scmp.eq.s32.totalorder %s8, 1
    %p39 = por %p37, %p38
    %p40 = scmp.ne.s32.totalorder %s32, %s35
    %p41 = scmp.eq.s32.totalorder %s8, 0
    %p42 = por %p40, %p41
    %p43 = scmp.ne.s32.totalorder %s32, %s35
    %p44 = scmp.eq.s32.totalorder %s13, 1
    %p45 = por %p43, %p44
    %p46 = scmp.ne.s32.totalorder %s35, %s36
    %p47 = scmp.eq.s32.totalorder %s13, 0
    %p48 = por %p46, %p47
    %p49 = scmp.ne.s32.totalorder %s35, %s36
    %p50 = scmp.eq.s32.totalorder %s14, 1
    %p51 = por %p49, %p50
    %p53 = scmp.ne.s32.totalorder %s36, %s52
    %p54 = scmp.eq.s32.totalorder %s14, 0
    %p55 = por %p53, %p54
    %s56 = sadd.s32 %s15, %s16
    %s57 = sadd.s32 %s27, %s23
    %s58 = ssub.s32 %s56, %s57
    %p59 = scmp.eq.s32.totalorder %s58, 0
    %s61 = sadd.s32 %s60, 1
    %s62 = scalar_select %p59, %s60, %s61
    %p65 = pneg %p59
    %p66 = scmp.eq.s32.totalorder %s8, 1
    %p67 = por %p65, %p66
    %p68 = scmp.ne.s32.totalorder %s60, %s63
    %p69 = scmp.eq.s32.totalorder %s8, 0
    %p70 = por %p68, %p69
    %p71 = scmp.ne.s32.totalorder %s60, %s63
    %p72 = scmp.eq.s32.totalorder %s13, 1
    %p73 = por %p71, %p72
    %p74 = scmp.ne.s32.totalorder %s63, %s64
    %p75 = scmp.eq.s32.totalorder %s13, 0
    %p76 = por %p74, %p75
    %p77 = scmp.ne.s32.totalorder %s63, %s64
    %p78 = scmp.eq.s32.totalorder %s14, 1
    %p79 = por %p77, %p78
    %p81 = scmp.ne.s32.totalorder %s64, %s80
    %p82 = scmp.eq.s32.totalorder %s14, 0
    %p83 = por %p81, %p82
    %s84 = ssub.s32 %s15, %s27
    %p85 = scmp.eq.s32.totalorder %s84, 0
    %s87 = sadd.s32 %s86, 1
    %s88 = scalar_select %p85, %s86, %s87
    %p91 = pneg %p85
    %p92 = scmp.eq.s32.totalorder %s8, 1
    %p93 = por %p91, %p92
    %p94 = scmp.ne.s32.totalorder %s86, %s89
    %p95 = scmp.eq.s32.totalorder %s8, 0
    %p96 = por %p94, %p95
    %p97 = scmp.ne.s32.totalorder %s86, %s89
    %p98 = scmp.eq.s32.totalorder %s13, 1
    %p99 = por %p97, %p98
    %p100 = scmp.ne.s32.totalorder %s89, %s90
    %p101 = scmp.eq.s32.totalorder %s13, 0
    %p102 = por %p100, %p101
    %p103 = scmp.ne.s32.totalorder %s89, %s90
    %p104 = scmp.eq.s32.totalorder %s14, 1
    %p105 = por %p103, %p104
    %p107 = scmp.ne.s32.totalorder %s90, %s106
    %p108 = scmp.eq.s32.totalorder %s14, 0
    %p109 = por %p107, %p108
    %p110 = scmp.le.s32.totalorder 1, %s8
    %p111 = scmp.lt.s32.totalorder %s8, 3
    %p112 = pnand %p110, %p111
    %p113 = pneg %p112
    // Predicated region
    $region9: #{l1c_deep_supervision_frequency_division_loss.2} parent=5 // pred_check
      _
    $region10: #{l1c_deep_supervision_frequency_division_loss.2} parent=5 // pred_check_branch
      %115 = sbr.rel (%p112) target = $region12
    $region11: #{l1c_deep_supervision_frequency_division_loss.2} parent=5 // pred_region
      %s116 = ssub.s32 %s8, 1
    $region12: #{l1c_deep_supervision_frequency_division_loss.2} parent=5 // pred_fallthru
      _
    %p117 = scmp.lt.s32.totalorder %s8, 2
    // Predicated region
    $region13: #{l1c_deep_supervision_frequency_division_loss.2} parent=5 // pred_check
      %p118 = pneg %p117
    $region14: #{l1c_deep_supervision_frequency_division_loss.2} parent=5 // pred_check_branch
      %120 = sbr.rel (%p118) target = $region16
    $region15: #{l1c_deep_supervision_frequency_division_loss.2} parent=5 // pred_region
      // Predicated region
      $region17: #{l1c_deep_supervision_frequency_division_loss.2} parent=15 // pred_check
        %p121 = pneg %p42
      $region18: #{l1c_deep_supervision_frequency_division_loss.2} parent=15 // pred_check_branch
        %123 = sbr.rel (%p121) target = $region20
      $region19: #{l1c_deep_supervision_frequency_division_loss.2} parent=15 // pred_region
        %s124 = sadd.s32 %s15, %s16
        %p125 = scmp.lt.s32.totalorder %s124, 1
        %s126 = scalar_select %p125, %s124, 1
        %s127 = smul.addr %s126, 8
        %s128 = scalar_lea.vmem %s0, %s127
        %s129 = sadd.s32 %s15, %s16
      $region20: #{l1c_deep_supervision_frequency_division_loss.2} parent=15 // pred_fallthru
        _
      // Predicated region
      $region21: #{l1c_deep_supervision_frequency_division_loss.2} parent=15 // pred_check
        %p130 = pneg %p70
      $region22: #{l1c_deep_supervision_frequency_division_loss.2} parent=15 // pred_check_branch
        %132 = sbr.rel (%p130) target = $region24
      $region23: #{l1c_deep_supervision_frequency_division_loss.2} parent=15 // pred_region
        %s133 = sadd.s32 %s15, %s16
        %p134 = scmp.lt.s32.totalorder %s133, 1
        %s135 = scalar_select %p134, %s133, 1
        %s136 = smul.addr %s135, 8
        %s137 = scalar_lea.vmem %s1, %s136
        %s138 = sadd.s32 %s15, %s16
      $region24: #{l1c_deep_supervision_frequency_division_loss.2} parent=15 // pred_fallthru
        _
    $region16: #{l1c_deep_supervision_frequency_division_loss.2} parent=5 // pred_fallthru
      _
    %p139 = scmp.le.s32.totalorder 1, %s8
    %p140 = scmp.lt.s32.totalorder %s8, 3
    %p141 = pnand %p139, %p140
    %p142 = pneg %p141
    // Predicated region
    $region25: #{l1c_deep_supervision_frequency_division_loss.2} parent=5 // pred_check
      _
    $region26: #{l1c_deep_supervision_frequency_division_loss.2} parent=5 // pred_check_branch
      %144 = sbr.rel (%p141) target = $region28
    $region27: #{l1c_deep_supervision_frequency_division_loss.2} parent=5 // pred_region
      %s145 = ssub.s32 %s8, 1
      %s146 = sadd.s32 %s17, %s18
      %p147 = scmp.lt.s32.totalorder %s146, 1
      %s148 = scalar_select %p147, %s146, 1
      %s149 = smul.addr %s148, 8
      %s150 = scalar_lea.vmem %s0, %s149
      %p151 = pneg %p48
      %p152 = pneg %p45
      %s153 = sadd.s32 %s17, %s18
      %p154 = scmp.lt.s32.totalorder %s153, 1
      %s155 = scalar_select %p154, %s153, 1
      %s156 = smul.addr %s155, 8
      %s157 = scalar_lea.vmem %s1, %s156
      %p158 = pneg %p76
      %p159 = pneg %p73
      %p160 = pneg %p102
      %p161 = pneg %p99
      %p162 = scmp.lt.s32.totalorder %s17, 1
      %s163 = scalar_select %p162, %s17, 1
      %s164 = smul.addr %s163, 8
      %s165 = scalar_lea.vmem %s2, %s164
      %s166 = sadd.s32 %s17, %s18
      %p167 = scmp.lt.s32.totalorder %s166, 1
      %s168 = scalar_select %p167, %s166, 1
      %s169 = smul.addr %s168, 8
      %s170 = scalar_lea.vmem %s0, %s169
      %s171 = sadd.s32 %s17, %s18
      %s172 = sadd.s32 %s17, %s18
      %p173 = scmp.lt.s32.totalorder %s172, 1
      %s174 = scalar_select %p173, %s172, 1
      %s175 = smul.addr %s174, 8
      %s176 = scalar_lea.vmem %s1, %s175
      %s177 = sadd.s32 %s17, %s18
      %p178 = scmp.lt.s32.totalorder %s17, 1
      %s179 = scalar_select %p178, %s17, 1
      %s180 = smul.addr %s179, 8
      %s181 = scalar_lea.vmem %s2, %s180
      %p182 = scmp.eq.s32.totalorder %s18, 0
      // Predicated region
      $region29: #{l1c_deep_supervision_frequency_division_loss.2} parent=27 // pred_check
        %p183 = pneg %p182
      $region30: #{l1c_deep_supervision_frequency_division_loss.2} parent=27 // pred_check_branch
        %185 = sbr.rel (%p183) target = $region32
      $region31: #{l1c_deep_supervision_frequency_division_loss.2} parent=27 // pred_region
        %186 = vst [vmem:[%s181] sm:$0xff] 0.0
      $region32: #{l1c_deep_supervision_frequency_division_loss.2} parent=27 // pred_fallthru
        _
      %v187 = vld [vmem:[%s170] sm:$0xff]
      %v188 = vld [vmem:[%s176] sm:$0xff]
      %v189 = vsub.f32 %v187, %v188
      %v190 = vmul.f32 %v189, %v189
      %v191 = vadd.f32 %v190, 1e-06
      %v192 = vrsqrt.pop %v191
      %v193 = vmul.f32 %v192, %v191
      %v194 = vmul.f32 %v193, %v192
      %v195 = vmul.f32 0.5, %v194
      %v196 = vsub.f32 1.5, %v195
      %v197 = vmul.f32 %v192, %v196
      %v198 = vmul.f32 %v191, %v197
      %vm199 = vcmp.eq.f32.partialorder %v191, inf
      %v200 = vsel %vm199, %v191, %v198
      %vm201 = vcmp.eq.f32.partialorder %v191, 0.0
      %v202 = vand.u32 %v191, 2147483648
      %v203 = vsel %vm201, %v202, %v200
      %s204 = sadd.s32 %s17, %s18
      %p205 = scmp.lt.s32.totalorder %s204, 1
      // Predicated region
      $region33: #{l1c_deep_supervision_frequency_division_loss.2} parent=27 // pred_check
        %p206 = pneg %p205
      $region34: #{l1c_deep_supervision_frequency_division_loss.2} parent=27 // pred_check_branch
        %208 = sbr.rel (%p206) target = $region36
      $region35: #{l1c_deep_supervision_frequency_division_loss.2} parent=27 // pred_region
        %v209 = vld [vmem:[%s181] sm:$0xff]
        %v210 = vadd.f32 %v209, %v203
        %211 = vst [vmem:[%s181] sm:$0xff] %v210
      $region36: #{l1c_deep_supervision_frequency_division_loss.2} parent=27 // pred_fallthru
        _
      %p212 = scmp.eq.s32.totalorder %s204, 1
      // Predicated region
      $region37: #{l1c_deep_supervision_frequency_division_loss.2} parent=27 // pred_check
        %p213 = pneg %p212
      $region38: #{l1c_deep_supervision_frequency_division_loss.2} parent=27 // pred_check_branch
        %215 = sbr.rel (%p213) target = $region40
      $region39: #{l1c_deep_supervision_frequency_division_loss.2} parent=27 // pred_region
        %v216 = vlaneseq
        %v217 = vshrl.u32 %v216, 7
        %v218 = vlaneseq
        %v219 = vand.u32 %v218, 127
        %v220 = vmul.u32 %v217, 128
        %v221 = vadd.s32 %v220, %v219
        %v222 = vld [vmem:[%s181] sm:$0xff]
        %vm223 = vcmp.lt.s32.totalorder %v221, 512
        %v224 = vsel %vm223, %v203, 0.0
        %v225 = vadd.f32 %v222, %v224
        %226 = vst [vmem:[%s181] sm:$0xff] %v225
      $region40: #{l1c_deep_supervision_frequency_division_loss.2} parent=27 // pred_fallthru
        _
      %p227 = scmp.lt.s32.totalorder %s17, 1
      %s228 = scalar_select %p227, %s17, 1
      %s229 = smul.addr %s228, 8
      %s230 = scalar_lea.vmem %s2, %s229
      // Predicated region
      $region41: #{l1c_deep_supervision_frequency_division_loss.2} parent=27 // pred_check
        %p231 = pneg %p99
      $region42: #{l1c_deep_supervision_frequency_division_loss.2} parent=27 // pred_check_branch
        %233 = sbr.rel (%p231) target = $region44
      $region43: #{l1c_deep_supervision_frequency_division_loss.2} parent=27 // pred_region
        _
      $region44: #{l1c_deep_supervision_frequency_division_loss.2} parent=27 // pred_fallthru
        _
    $region28: #{l1c_deep_supervision_frequency_division_loss.2} parent=5 // pred_fallthru
      _
    %p234 = scmp.le.s32.totalorder 2, %s8
    // Predicated region
    $region45: #{l1c_deep_supervision_frequency_division_loss.2} parent=5 // pred_check
      %p235 = pneg %p234
    $region46: #{l1c_deep_supervision_frequency_division_loss.2} parent=5 // pred_check_branch
      %237 = sbr.rel (%p235) target = $region48
    $region47: #{l1c_deep_supervision_frequency_division_loss.2} parent=5 // pred_region
      %s238 = ssub.s32 %s8, 2
      // Predicated region
      $region49: #{l1c_deep_supervision_frequency_division_loss.2} parent=47 // pred_check
        %p239 = pneg %p105
      $region50: #{l1c_deep_supervision_frequency_division_loss.2} parent=47 // pred_check_branch
        %241 = sbr.rel (%p239) target = $region52
      $region51: #{l1c_deep_supervision_frequency_division_loss.2} parent=47 // pred_region
        %p242 = scmp.lt.s32.totalorder %s19, 1
        %s243 = scalar_select %p242, %s19, 1
        %s244 = smul.addr %s243, 8
        %s245 = scalar_lea.vmem %s2, %s244
      $region52: #{l1c_deep_supervision_frequency_division_loss.2} parent=47 // pred_fallthru
        _
    $region48: #{l1c_deep_supervision_frequency_division_loss.2} parent=5 // pred_fallthru
      _
  $region6: #{l1c_deep_supervision_frequency_division_loss.2} parent=0 // loop_footer
    %s12 = sadd.s32 1, %s8
  $region7: #{l1c_deep_supervision_frequency_division_loss.2} parent=0 // loop_footer_branch
    %7 = sbr.rel target = $region3
  $region8: #{l1c_deep_supervision_frequency_division_loss.2} parent=0 // loop_exit
    _

</llo_original>
